<compile_context>
chip_gen: v5e
topology: v5e:2x2
jax: 0.10.0
libtpu: 0.0.40
codegen_flags: <defaults>
</compile_context>

<pallas_src>
import jax
import jax.numpy as jnp
from jax.experimental import pallas as pl
from jax.experimental.pallas import tpu as pltpu

# ---------------- module hyper-parameters (small, consistent with __init__) ---
IN_C = 4
OUT_C = 4
KSIZE = 1
USE_BW = True            # kernel below assumes use_bw=True (channel == 2)
USE_BIAS = True

CHANNEL = 1 + USE_BW                                  # MLP input features = 2
HIDDEN = 256
OUT_DIM = OUT_C * (IN_C * KSIZE * KSIZE + USE_BIAS)   # 4*(4+1) = 20

# padded output tile (sublane=8, lane=128 aligned -> one f32 vreg, unmasked store)
PAD_M = 8                # also the max batch of (wl, bw) pairs per call
PAD_N = 128


# ------------------------------- Pallas kernel --------------------------------
def _meta_mlp_kernel(wl_ref, bw_ref, w1_ref, b1_ref, w2_ref, b2_ref, y_ref):
    # Layer 1 (2 -> 256), one (wl, bw) pair per sublane row.
    # Scalars come from SMEM; each row is two scalar-broadcast FMAs on the VPU.
    rows = []
    for r in range(PAD_M):                                   # unrolled, 8 rows
        wl_n = (wl_ref[r] - 550.0) / 10.0                    # /10.0: exact parity
        bw_n = bw_ref[r] - 55.0
        rows.append(wl_n * w1_ref[0:1, :] + bw_n * w1_ref[1:2, :] + b1_ref[...])
    h = jnp.concatenate(rows, axis=0)                        # (8, 256) real work/row
    h = jnp.maximum(h, 0.0)                                  # ReLU

    # Layer 2 (256 -> 128 padded) on the MXU; lane-dense output, f32 accumulate.
    z = jnp.dot(h, w2_ref[...], preferred_element_type=jnp.float32)  # (8, 128)
    z = z + b2_ref[...]
    y_ref[...] = jax.nn.sigmoid(z)                           # one unmasked vreg store


def run_meta_mlp_padded(wl8, bw8, pparams):
    """Raw padded (8, 128) output tile.

    Row r corresponds to (wl8[r], bw8[r]); only lanes [0, OUT_DIM) are valid
    (padded lanes hold sigmoid(0) = 0.5).  Consumers should call this inside
    their own jit region and slice/index the tile there.
    """
    vmem = pl.BlockSpec(memory_space=pltpu.MemorySpace.VMEM)
    smem = pl.BlockSpec(memory_space=pltpu.MemorySpace.SMEM)
    w1, b1 = pparams["w1"], pparams["b1"]
    w2_pad, b2_pad = pparams["w2_pad"], pparams["b2_pad"]
    cost = pl.CostEstimate(
        flops=2 * PAD_M * HIDDEN * PAD_N + 2 * PAD_M * CHANNEL * HIDDEN,
        transcendentals=PAD_M * PAD_N,
        bytes_accessed=4 * (wl8.size + bw8.size + w1.size + b1.size
                            + w2_pad.size + b2_pad.size + PAD_M * PAD_N),
    )
    return pl.pallas_call(
        _meta_mlp_kernel,
        out_shape=jax.ShapeDtypeStruct((PAD_M, PAD_N), jnp.float32),
        in_specs=[smem, smem, vmem, vmem, vmem, vmem],
        out_specs=vmem,
        cost_estimate=cost,
    )(wl8, bw8, w1, b1, w2_pad, b2_pad)


# ------------------------------- params / glue --------------------------------
def init_params(key):
    """Deterministic init mimicking nn.Linear default (uniform +-1/sqrt(fan_in))."""
    k1, k2, k3, k4 = jax.random.split(key, 4)
    lim1 = 1.0 / jnp.sqrt(jnp.float32(CHANNEL))
    lim2 = 1.0 / jnp.sqrt(jnp.float32(HIDDEN))
    w1 = jax.random.uniform(k1, (CHANNEL, HIDDEN), jnp.float32, -lim1, lim1)
    b1 = jax.random.uniform(k2, (HIDDEN,), jnp.float32, -lim1, lim1)
    w2 = jax.random.uniform(k3, (HIDDEN, OUT_DIM), jnp.float32, -lim2, lim2)
    b2 = jax.random.uniform(k4, (OUT_DIM,), jnp.float32, -lim2, lim2)
    return dict(w1=w1, b1=b1, w2=w2, b2=b2)


def prepare_params(params):
    """One-time padding / layout prep (hoisted out of the per-call forward)."""
    w2_pad = jnp.zeros((HIDDEN, PAD_N), jnp.float32).at[:, :OUT_DIM].set(params["w2"])
    b2_pad = jnp.zeros((1, PAD_N), jnp.float32).at[0, :OUT_DIM].set(params["b2"])
    return dict(
        w1=params["w1"].astype(jnp.float32),            # (2, 256) unpadded
        b1=params["b1"].reshape(1, HIDDEN).astype(jnp.float32),
        w2_pad=w2_pad,                                   # (256, 128) pre-padded
        b2_pad=b2_pad,                                   # (1, 128) pre-padded
    )


def wl2weight_forward_batched(wl8, bw8, pparams):
    """Batched forward: wl8, bw8 are (8,) f32 arrays (one (wl, bw) pair per row).

    Returns (weights (8, outC, inC, kH, kW), biases (8, outC)).  Call from
    inside the consumer's jit so the slice/reshape fuse into the consumer.
    """
    y_pad = run_meta_mlp_padded(wl8, bw8, pparams)              # (8, 128)
    weights = y_pad[:, :OUT_DIM - OUT_C].reshape(PAD_M, OUT_C, IN_C, KSIZE, KSIZE)
    biases = y_pad[:, OUT_DIM - OUT_C:OUT_DIM]                  # (8, outC)
    return weights, biases


def wl2weight_forward(wl, bw, pparams):
    """Single-pair convenience path matching the nn.Module's (weight, bias)."""
    # Broadcast the single pair across the 8 sublane rows the tile pays for
    # anyway; row 0 is used.  Prefer the batched path when multiple weight
    # sets are needed, and call from inside the consumer's jit region.
    wl8 = jnp.full((PAD_M,), wl, jnp.float32)
    bw8 = jnp.full((PAD_M,), bw, jnp.float32)
    y_pad = run_meta_mlp_padded(wl8, bw8, pparams)
    y = y_pad[0, :OUT_DIM]
    if USE_BIAS:
        bias = y[-OUT_C:]
        weight = y[:-OUT_C].reshape(OUT_C, IN_C, KSIZE, KSIZE)
        return weight, bias
    return y.reshape(OUT_C, IN_C, KSIZE, KSIZE)


# pure-JAX reference for sanity check (single pair)
def _reference(wl, bw, params):
    wl_n = (wl.astype(jnp.float32) - 550.0) / 10.0
    bw_n = bw.astype(jnp.float32) - 55.0
    x = jnp.stack([wl_n, bw_n]).reshape(1, CHANNEL)
    h = jnp.maximum(x @ params["w1"] + params["b1"], 0.0)
    y = jax.nn.sigmoid(h @ params["w2"] + params["b2"])[0]
    return y[:-OUT_C].reshape(OUT_C, IN_C, KSIZE, KSIZE), y[-OUT_C:]


if __name__ == "__main__":
    key = jax.random.PRNGKey(0)
    k_p, k_wl, k_bw = jax.random.split(key, 3)

    params = init_params(k_p)
    pparams = prepare_params(params)                 # padding done once, at init

    # 8 distinct (wavelength, bandwidth) pairs — one per sublane row.
    wl8 = 550.0 + 10.0 * jax.random.normal(k_wl, (PAD_M,), jnp.float32)
    bw8 = 55.0 + 5.0 * jax.random.normal(k_bw, (PAD_M,), jnp.float32)

    # Batched path: 8 weight/bias sets from a single kernel launch.
    fwd_batched = jax.jit(wl2weight_forward_batched)
    weights, biases = fwd_batched(wl8, bw8, pparams)
    jax.block_until_ready((weights, biases))

    assert weights.shape == (PAD_M, OUT_C, IN_C, KSIZE, KSIZE)
    assert biases.shape == (PAD_M, OUT_C)
    for r in range(PAD_M):
        w_ref, b_ref = _reference(wl8[r], bw8[r], params)
        assert jnp.allclose(weights[r], w_ref, atol=1e-5)
        assert jnp.allclose(biases[r], b_ref, atol=1e-5)

    # Single-pair compatibility path (same signature as the nn.Module forward).
    fwd_single = jax.jit(wl2weight_forward)
    w_one, b_one = fwd_single(wl8[0], bw8[0], pparams)
    jax.block_until_ready((w_one, b_one))
    w_ref, b_ref = _reference(wl8[0], bw8[0], params)
    assert w_one.shape == (OUT_C, IN_C, KSIZE, KSIZE)
    assert b_one.shape == (OUT_C,)
    assert jnp.allclose(w_one, w_ref, atol=1e-5)
    assert jnp.allclose(b_one, b_ref, atol=1e-5)

    print("KERNEL_OK")
</pallas_src>

<mosaic_0001>
module attributes {stable_mosaic.version = 11 : i64} {
  func.func @_meta_mlp_kernel(%arg0: memref<8xf32, #tpu.memory_space<smem>>, %arg1: memref<8xf32, #tpu.memory_space<smem>>, %arg2: memref<2x256xf32, #tpu.memory_space<vmem>>, %arg3: memref<1x256xf32, #tpu.memory_space<vmem>>, %arg4: memref<256x128xf32, #tpu.memory_space<vmem>>, %arg5: memref<1x128xf32, #tpu.memory_space<vmem>>, %arg6: memref<8x128xf32, #tpu.memory_space<vmem>>) attributes {dimension_semantics = [], scalar_prefetch = 0 : i64, scratch_operands = 0 : i64, tpu.core_type = #tpu.core_type<tc>} {
    %c0 = arith.constant 0 : index
    %0 = memref.load %arg0[%c0] : memref<8xf32, #tpu.memory_space<smem>>
    %cst = arith.constant 5.500000e+02 : f32
    %1 = arith.subf %0, %cst : f32
    %cst_0 = arith.constant 1.000000e+01 : f32
    %2 = arith.divf %1, %cst_0 : f32
    %c0_1 = arith.constant 0 : index
    %3 = memref.load %arg1[%c0_1] : memref<8xf32, #tpu.memory_space<smem>>
    %cst_2 = arith.constant 5.500000e+01 : f32
    %4 = arith.subf %3, %cst_2 : f32
    %c0_3 = arith.constant 0 : index
    %c0_4 = arith.constant 0 : index
    %5 = vector.load %arg2[%c0_3, %c0_4] : memref<2x256xf32, #tpu.memory_space<vmem>>, vector<1x256xf32>
    %6 = vector.broadcast %2 : f32 to vector<1x256xf32>
    %7 = arith.mulf %6, %5 : vector<1x256xf32>
    %c1 = arith.constant 1 : index
    %c0_5 = arith.constant 0 : index
    %8 = vector.load %arg2[%c1, %c0_5] : memref<2x256xf32, #tpu.memory_space<vmem>>, vector<1x256xf32>
    %9 = vector.broadcast %4 : f32 to vector<1x256xf32>
    %10 = arith.mulf %9, %8 : vector<1x256xf32>
    %11 = arith.addf %7, %10 : vector<1x256xf32>
    %c0_6 = arith.constant 0 : index
    %c0_7 = arith.constant 0 : index
    %12 = vector.load %arg3[%c0_6, %c0_7] : memref<1x256xf32, #tpu.memory_space<vmem>>, vector<1x256xf32>
    %13 = arith.addf %11, %12 : vector<1x256xf32>
    %c1_8 = arith.constant 1 : index
    %14 = memref.load %arg0[%c1_8] : memref<8xf32, #tpu.memory_space<smem>>
    %cst_9 = arith.constant 5.500000e+02 : f32
    %15 = arith.subf %14, %cst_9 : f32
    %cst_10 = arith.constant 1.000000e+01 : f32
    %16 = arith.divf %15, %cst_10 : f32
    %c1_11 = arith.constant 1 : index
    %17 = memref.load %arg1[%c1_11] : memref<8xf32, #tpu.memory_space<smem>>
    %cst_12 = arith.constant 5.500000e+01 : f32
    %18 = arith.subf %17, %cst_12 : f32
    %c0_13 = arith.constant 0 : index
    %c0_14 = arith.constant 0 : index
    %19 = vector.load %arg2[%c0_13, %c0_14] : memref<2x256xf32, #tpu.memory_space<vmem>>, vector<1x256xf32>
    %20 = vector.broadcast %16 : f32 to vector<1x256xf32>
    %21 = arith.mulf %20, %19 : vector<1x256xf32>
    %c1_15 = arith.constant 1 : index
    %c0_16 = arith.constant 0 : index
    %22 = vector.load %arg2[%c1_15, %c0_16] : memref<2x256xf32, #tpu.memory_space<vmem>>, vector<1x256xf32>
    %23 = vector.broadcast %18 : f32 to vector<1x256xf32>
    %24 = arith.mulf %23, %22 : vector<1x256xf32>
    %25 = arith.addf %21, %24 : vector<1x256xf32>
    %c0_17 = arith.constant 0 : index
    %c0_18 = arith.constant 0 : index
    %26 = vector.load %arg3[%c0_17, %c0_18] : memref<1x256xf32, #tpu.memory_space<vmem>>, vector<1x256xf32>
    %27 = arith.addf %25, %26 : vector<1x256xf32>
    %c2 = arith.constant 2 : index
    %28 = memref.load %arg0[%c2] : memref<8xf32, #tpu.memory_space<smem>>
    %cst_19 = arith.constant 5.500000e+02 : f32
    %29 = arith.subf %28, %cst_19 : f32
    %cst_20 = arith.constant 1.000000e+01 : f32
    %30 = arith.divf %29, %cst_20 : f32
    %c2_21 = arith.constant 2 : index
    %31 = memref.load %arg1[%c2_21] : memref<8xf32, #tpu.memory_space<smem>>
    %cst_22 = arith.constant 5.500000e+01 : f32
    %32 = arith.subf %31, %cst_22 : f32
    %c0_23 = arith.constant 0 : index
    %c0_24 = arith.constant 0 : index
    %33 = vector.load %arg2[%c0_23, %c0_24] : memref<2x256xf32, #tpu.memory_space<vmem>>, vector<1x256xf32>
    %34 = vector.broadcast %30 : f32 to vector<1x256xf32>
    %35 = arith.mulf %34, %33 : vector<1x256xf32>
    %c1_25 = arith.constant 1 : index
    %c0_26 = arith.constant 0 : index
    %36 = vector.load %arg2[%c1_25, %c0_26] : memref<2x256xf32, #tpu.memory_space<vmem>>, vector<1x256xf32>
    %37 = vector.broadcast %32 : f32 to vector<1x256xf32>
    %38 = arith.mulf %37, %36 : vector<1x256xf32>
    %39 = arith.addf %35, %38 : vector<1x256xf32>
    %c0_27 = arith.constant 0 : index
    %c0_28 = arith.constant 0 : index
    %40 = vector.load %arg3[%c0_27, %c0_28] : memref<1x256xf32, #tpu.memory_space<vmem>>, vector<1x256xf32>
    %41 = arith.addf %39, %40 : vector<1x256xf32>
    %c3 = arith.constant 3 : index
    %42 = memref.load %arg0[%c3] : memref<8xf32, #tpu.memory_space<smem>>
    %cst_29 = arith.constant 5.500000e+02 : f32
    %43 = arith.subf %42, %cst_29 : f32
    %cst_30 = arith.constant 1.000000e+01 : f32
    %44 = arith.divf %43, %cst_30 : f32
    %c3_31 = arith.constant 3 : index
    %45 = memref.load %arg1[%c3_31] : memref<8xf32, #tpu.memory_space<smem>>
    %cst_32 = arith.constant 5.500000e+01 : f32
    %46 = arith.subf %45, %cst_32 : f32
    %c0_33 = arith.constant 0 : index
    %c0_34 = arith.constant 0 : index
    %47 = vector.load %arg2[%c0_33, %c0_34] : memref<2x256xf32, #tpu.memory_space<vmem>>, vector<1x256xf32>
    %48 = vector.broadcast %44 : f32 to vector<1x256xf32>
    %49 = arith.mulf %48, %47 : vector<1x256xf32>
    %c1_35 = arith.constant 1 : index
    %c0_36 = arith.constant 0 : index
    %50 = vector.load %arg2[%c1_35, %c0_36] : memref<2x256xf32, #tpu.memory_space<vmem>>, vector<1x256xf32>
    %51 = vector.broadcast %46 : f32 to vector<1x256xf32>
    %52 = arith.mulf %51, %50 : vector<1x256xf32>
    %53 = arith.addf %49, %52 : vector<1x256xf32>
    %c0_37 = arith.constant 0 : index
    %c0_38 = arith.constant 0 : index
    %54 = vector.load %arg3[%c0_37, %c0_38] : memref<1x256xf32, #tpu.memory_space<vmem>>, vector<1x256xf32>
    %55 = arith.addf %53, %54 : vector<1x256xf32>
    %c4 = arith.constant 4 : index
    %56 = memref.load %arg0[%c4] : memref<8xf32, #tpu.memory_space<smem>>
    %cst_39 = arith.constant 5.500000e+02 : f32
    %57 = arith.subf %56, %cst_39 : f32
    %cst_40 = arith.constant 1.000000e+01 : f32
    %58 = arith.divf %57, %cst_40 : f32
    %c4_41 = arith.constant 4 : index
    %59 = memref.load %arg1[%c4_41] : memref<8xf32, #tpu.memory_space<smem>>
    %cst_42 = arith.constant 5.500000e+01 : f32
    %60 = arith.subf %59, %cst_42 : f32
    %c0_43 = arith.constant 0 : index
    %c0_44 = arith.constant 0 : index
    %61 = vector.load %arg2[%c0_43, %c0_44] : memref<2x256xf32, #tpu.memory_space<vmem>>, vector<1x256xf32>
    %62 = vector.broadcast %58 : f32 to vector<1x256xf32>
    %63 = arith.mulf %62, %61 : vector<1x256xf32>
    %c1_45 = arith.constant 1 : index
    %c0_46 = arith.constant 0 : index
    %64 = vector.load %arg2[%c1_45, %c0_46] : memref<2x256xf32, #tpu.memory_space<vmem>>, vector<1x256xf32>
    %65 = vector.broadcast %60 : f32 to vector<1x256xf32>
    %66 = arith.mulf %65, %64 : vector<1x256xf32>
    %67 = arith.addf %63, %66 : vector<1x256xf32>
    %c0_47 = arith.constant 0 : index
    %c0_48 = arith.constant 0 : index
    %68 = vector.load %arg3[%c0_47, %c0_48] : memref<1x256xf32, #tpu.memory_space<vmem>>, vector<1x256xf32>
    %69 = arith.addf %67, %68 : vector<1x256xf32>
    %c5 = arith.constant 5 : index
    %70 = memref.load %arg0[%c5] : memref<8xf32, #tpu.memory_space<smem>>
    %cst_49 = arith.constant 5.500000e+02 : f32
    %71 = arith.subf %70, %cst_49 : f32
    %cst_50 = arith.constant 1.000000e+01 : f32
    %72 = arith.divf %71, %cst_50 : f32
    %c5_51 = arith.constant 5 : index
    %73 = memref.load %arg1[%c5_51] : memref<8xf32, #tpu.memory_space<smem>>
    %cst_52 = arith.constant 5.500000e+01 : f32
    %74 = arith.subf %73, %cst_52 : f32
    %c0_53 = arith.constant 0 : index
    %c0_54 = arith.constant 0 : index
    %75 = vector.load %arg2[%c0_53, %c0_54] : memref<2x256xf32, #tpu.memory_space<vmem>>, vector<1x256xf32>
    %76 = vector.broadcast %72 : f32 to vector<1x256xf32>
    %77 = arith.mulf %76, %75 : vector<1x256xf32>
    %c1_55 = arith.constant 1 : index
    %c0_56 = arith.constant 0 : index
    %78 = vector.load %arg2[%c1_55, %c0_56] : memref<2x256xf32, #tpu.memory_space<vmem>>, vector<1x256xf32>
    %79 = vector.broadcast %74 : f32 to vector<1x256xf32>
    %80 = arith.mulf %79, %78 : vector<1x256xf32>
    %81 = arith.addf %77, %80 : vector<1x256xf32>
    %c0_57 = arith.constant 0 : index
    %c0_58 = arith.constant 0 : index
    %82 = vector.load %arg3[%c0_57, %c0_58] : memref<1x256xf32, #tpu.memory_space<vmem>>, vector<1x256xf32>
    %83 = arith.addf %81, %82 : vector<1x256xf32>
    %c6 = arith.constant 6 : index
    %84 = memref.load %arg0[%c6] : memref<8xf32, #tpu.memory_space<smem>>
    %cst_59 = arith.constant 5.500000e+02 : f32
    %85 = arith.subf %84, %cst_59 : f32
    %cst_60 = arith.constant 1.000000e+01 : f32
    %86 = arith.divf %85, %cst_60 : f32
    %c6_61 = arith.constant 6 : index
    %87 = memref.load %arg1[%c6_61] : memref<8xf32, #tpu.memory_space<smem>>
    %cst_62 = arith.constant 5.500000e+01 : f32
    %88 = arith.subf %87, %cst_62 : f32
    %c0_63 = arith.constant 0 : index
    %c0_64 = arith.constant 0 : index
    %89 = vector.load %arg2[%c0_63, %c0_64] : memref<2x256xf32, #tpu.memory_space<vmem>>, vector<1x256xf32>
    %90 = vector.broadcast %86 : f32 to vector<1x256xf32>
    %91 = arith.mulf %90, %89 : vector<1x256xf32>
    %c1_65 = arith.constant 1 : index
    %c0_66 = arith.constant 0 : index
    %92 = vector.load %arg2[%c1_65, %c0_66] : memref<2x256xf32, #tpu.memory_space<vmem>>, vector<1x256xf32>
    %93 = vector.broadcast %88 : f32 to vector<1x256xf32>
    %94 = arith.mulf %93, %92 : vector<1x256xf32>
    %95 = arith.addf %91, %94 : vector<1x256xf32>
    %c0_67 = arith.constant 0 : index
    %c0_68 = arith.constant 0 : index
    %96 = vector.load %arg3[%c0_67, %c0_68] : memref<1x256xf32, #tpu.memory_space<vmem>>, vector<1x256xf32>
    %97 = arith.addf %95, %96 : vector<1x256xf32>
    %c7 = arith.constant 7 : index
    %98 = memref.load %arg0[%c7] : memref<8xf32, #tpu.memory_space<smem>>
    %cst_69 = arith.constant 5.500000e+02 : f32
    %99 = arith.subf %98, %cst_69 : f32
    %cst_70 = arith.constant 1.000000e+01 : f32
    %100 = arith.divf %99, %cst_70 : f32
    %c7_71 = arith.constant 7 : index
    %101 = memref.load %arg1[%c7_71] : memref<8xf32, #tpu.memory_space<smem>>
    %cst_72 = arith.constant 5.500000e+01 : f32
    %102 = arith.subf %101, %cst_72 : f32
    %c0_73 = arith.constant 0 : index
    %c0_74 = arith.constant 0 : index
    %103 = vector.load %arg2[%c0_73, %c0_74] : memref<2x256xf32, #tpu.memory_space<vmem>>, vector<1x256xf32>
    %104 = vector.broadcast %100 : f32 to vector<1x256xf32>
    %105 = arith.mulf %104, %103 : vector<1x256xf32>
    %c1_75 = arith.constant 1 : index
    %c0_76 = arith.constant 0 : index
    %106 = vector.load %arg2[%c1_75, %c0_76] : memref<2x256xf32, #tpu.memory_space<vmem>>, vector<1x256xf32>
    %107 = vector.broadcast %102 : f32 to vector<1x256xf32>
    %108 = arith.mulf %107, %106 : vector<1x256xf32>
    %109 = arith.addf %105, %108 : vector<1x256xf32>
    %c0_77 = arith.constant 0 : index
    %c0_78 = arith.constant 0 : index
    %110 = vector.load %arg3[%c0_77, %c0_78] : memref<1x256xf32, #tpu.memory_space<vmem>>, vector<1x256xf32>
    %111 = arith.addf %109, %110 : vector<1x256xf32>
    %112 = tpu.concatenate %13, %27, %41, %55, %69, %83, %97, %111 in 0 : vector<1x256xf32>, vector<1x256xf32>, vector<1x256xf32>, vector<1x256xf32>, vector<1x256xf32>, vector<1x256xf32>, vector<1x256xf32>, vector<1x256xf32> -> vector<8x256xf32>
    %cst_79 = arith.constant 0.000000e+00 : f32
    %113 = vector.broadcast %cst_79 : f32 to vector<8x256xf32>
    %114 = arith.maximumf %112, %113 : vector<8x256xf32>
    %c0_80 = arith.constant 0 : index
    %c0_81 = arith.constant 0 : index
    %115 = vector.load %arg4[%c0_80, %c0_81] : memref<256x128xf32, #tpu.memory_space<vmem>>, vector<256x128xf32>
    %cst_82 = arith.constant dense<0.000000e+00> : vector<8x128xf32>
    %116 = tpu.matmul %114, %115, %cst_82 {dimension_numbers = #tpu.dot_dimension_numbers<[1], [0], [0], [1], [0, 0, 1, 1], [], []>} : vector<8x256xf32>, vector<256x128xf32>, vector<8x128xf32> -> vector<8x128xf32>
    %c0_83 = arith.constant 0 : index
    %c0_84 = arith.constant 0 : index
    %117 = vector.load %arg5[%c0_83, %c0_84] : memref<1x128xf32, #tpu.memory_space<vmem>>, vector<1x128xf32>
    %118 = vector.broadcast %117 : vector<1x128xf32> to vector<8x128xf32>
    %119 = arith.addf %116, %118 : vector<8x128xf32>
    %120 = arith.negf %119 : vector<8x128xf32>
    %121 = math.exp %120 : vector<8x128xf32>
    %cst_85 = arith.constant 1.000000e+00 : f32
    %122 = vector.broadcast %cst_85 : f32 to vector<8x128xf32>
    %123 = arith.addf %122, %121 : vector<8x128xf32>
    %124 = arith.divf %122, %123 : vector<8x128xf32>
    %c0_86 = arith.constant 0 : index
    %c0_87 = arith.constant 0 : index
    %125 = vector.load %arg6[%c0_86, %c0_87] : memref<8x128xf32, #tpu.memory_space<vmem>>, vector<8x128xf32>
    tpu.vector_store %arg6[%c0_86, %c0_87], %124 {strides = array<i32>} : memref<8x128xf32, #tpu.memory_space<vmem>>, vector<8x128xf32>,
    return
  }
}

</mosaic_0001>

<llo_original>
// kernel: wl2weight_forward_batched.1
$region0: #{wl2weight_forward_batched.1}
  #allocation0 [shape = 'u32[]', space=smem, size = 0x4, offset = 0x4, fixed_abs, tag = 'smem constant byte address 0x4 - core index']
  #allocation1 [shape = 'u32[72,128]{1,0:T(1,128)}', space=vmem, size = 0x9000, scoped, tag = 'internal scratch']
  %s0 = inlined_call_operand.hbm [shape: f32[8], index: 0, kind: input, shape index: {}]
  %s1 = inlined_call_operand.hbm [shape: f32[8], index: 1, kind: input, shape index: {}]
  %s2 = inlined_call_operand.hbm [shape: f32[2,256], index: 2, kind: input, shape index: {}]
  %s3 = inlined_call_operand.hbm [shape: f32[1,256], index: 3, kind: input, shape index: {}]
  %s4 = inlined_call_operand.hbm [shape: f32[256,128], index: 4, kind: input, shape index: {}]
  %s5 = inlined_call_operand.vmem [shape: f32[1,128], index: 5, kind: input, shape index: {}]
  %s6 = inlined_call_operand.vmem [shape: f32[8,128], index: 6, kind: output, shape index: {}]
  %s7 = sld [smem:[#allocation0]]
  $region54: #{wl2weight_forward_batched.1} parent=0
    _
  %s9 = ssub.s32 1, %s7
  %s10 = scalar_select 0, %s9, %s7
  $region1: #{wl2weight_forward_batched.1} parent=0
    #allocation2 [shape = 'u8[512]{0}', space=smem, size = 0x200, scoped, tag = 'input window, operand 0, single buffered']
    #allocation3 [shape = 's32[1]{0}', space=sflag, size = 0x4, scoped, tag = 'scoped memory for wl2weight_forward_batched.1']
    #allocation4 [shape = 's32[1]{0}', space=sflag, size = 0x4, scoped, tag = 'scoped memory for wl2weight_forward_batched.1']
    #allocation5 [shape = 'u8[512]{0}', space=smem, size = 0x200, scoped, tag = 'input window, operand 1, single buffered']
    #allocation6 [shape = 's32[1]{0}', space=sflag, size = 0x4, scoped, tag = 'scoped memory for wl2weight_forward_batched.1']
    #allocation7 [shape = 'u8[2048]{0}', space=vmem, size = 0x800, scoped, tag = 'input window, operand 2, single buffered']
    #allocation8 [shape = 'u8[1024]{0}', space=vmem, size = 0x400, scoped, tag = 'input window, operand 3, single buffered']
    #allocation9 [shape = 's32[1]{0}', space=sflag, size = 0x4, scoped, tag = 'scoped memory for wl2weight_forward_batched.1']
    #allocation10 [shape = 'u8[131072]{0}', space=vmem, size = 0x20000, scoped, tag = 'input window, operand 4, single buffered']
    %11 = vsyncpa [#allocation4], 0
    %12 = vsyncpa [#allocation6], 0
    %13 = vsyncpa [#allocation3], 0
    %14 = vsyncpa [#allocation9], 0
    // Predicated region
    $region2: #{wl2weight_forward_batched.1} parent=1 // pred_check
      _
    $region3: #{wl2weight_forward_batched.1} parent=1 // pred_check_branch
      %16 = sbr.rel (0) target = $region5
    $region4: #{wl2weight_forward_batched.1} parent=1 // pred_region
      %18 = vsyncadd [#allocation4], 0
      %s20 = sshll.u32 %s0, 4
      %s21 = int_to_ptr.hbm [resolvable:$true] %s20
      %23 = dma.hbm_to_smem %s21, 16, [#allocation2], [#allocation4]
    $region5: #{wl2weight_forward_batched.1} parent=1 // pred_fallthru
      _
    // Predicated region
    $region6: #{wl2weight_forward_batched.1} parent=1 // pred_check
      _
    $region7: #{wl2weight_forward_batched.1} parent=1 // pred_check_branch
      %25 = sbr.rel (0) target = $region9
    $region8: #{wl2weight_forward_batched.1} parent=1 // pred_region
      %27 = vsyncadd [#allocation6], 0
      %s29 = sshll.u32 %s1, 4
      %s30 = int_to_ptr.hbm [resolvable:$true] %s29
      %32 = dma.hbm_to_smem %s30, 16, [#allocation5], [#allocation6]
    $region9: #{wl2weight_forward_batched.1} parent=1 // pred_fallthru
      _
    // Predicated region
    $region10: #{wl2weight_forward_batched.1} parent=1 // pred_check
      _
    $region11: #{wl2weight_forward_batched.1} parent=1 // pred_check_branch
      %34 = sbr.rel (0) target = $region13
    $region12: #{wl2weight_forward_batched.1} parent=1 // pred_region
      %36 = vsyncadd [#allocation3], 0
      %s38 = sshll.u32 %s2, 4
      %s39 = int_to_ptr.hbm [resolvable:$true] %s38
      %s40 = sshll.u32 [#allocation7], 4
      %s41 = int_to_ptr.vmem [resolvable:$true] %s40
      %43 = dma.hbm_to_vmem [thread:$0]  %s39, 64, %s41, [#allocation3]
    $region13: #{wl2weight_forward_batched.1} parent=1 // pred_fallthru
      _
    // Predicated region
    $region14: #{wl2weight_forward_batched.1} parent=1 // pred_check
      _
    $region15: #{wl2weight_forward_batched.1} parent=1 // pred_check_branch
      %45 = sbr.rel (0) target = $region17
    $region16: #{wl2weight_forward_batched.1} parent=1 // pred_region
      %47 = vsyncadd [#allocation9], 0
      %s49 = sshll.u32 %s3, 4
      %s50 = int_to_ptr.hbm [resolvable:$true] %s49
      %s51 = sshll.u32 [#allocation8], 4
      %s52 = int_to_ptr.vmem [resolvable:$true] %s51
      %54 = dma.hbm_to_vmem [thread:$0]  %s50, 32, %s52, [#allocation9]
    $region17: #{wl2weight_forward_batched.1} parent=1 // pred_fallthru
      _
    // Predicated region
    $region18: #{wl2weight_forward_batched.1} parent=1 // pred_check
      _
    $region19: #{wl2weight_forward_batched.1} parent=1 // pred_check_branch
      %56 = sbr.rel (0) target = $region21
    $region20: #{wl2weight_forward_batched.1} parent=1 // pred_region
      %58 = vsyncadd [#allocation9], 0
      %s59 = sshll.u32 %s4, 4
      %s60 = int_to_ptr.hbm [resolvable:$true] %s59
      %s61 = sshll.u32 [#allocation10], 4
      %s62 = int_to_ptr.vmem [resolvable:$true] %s61
      %67 = dma.hbm_to_vmem [thread:$0]  %s60, 4096, %s62, [#allocation9], 128, 128, 8
    $region21: #{wl2weight_forward_batched.1} parent=1 // pred_fallthru
      _
    // Predicated region
    $region22: #{wl2weight_forward_batched.1} parent=1 // pred_check
      _
    $region23: #{wl2weight_forward_batched.1} parent=1 // pred_check_branch
      %69 = sbr.rel (0) target = $region25
    $region24: #{wl2weight_forward_batched.1} parent=1 // pred_region
      _
    $region25: #{wl2weight_forward_batched.1} parent=1 // pred_fallthru
      _
    // Predicated region
    $region26: #{wl2weight_forward_batched.1} parent=1 // pred_check
      _
    $region27: #{wl2weight_forward_batched.1} parent=1 // pred_check_branch
      %71 = sbr.rel (0) target = $region29
    $region28: #{wl2weight_forward_batched.1} parent=1 // pred_region
      %73 = dma.done [#allocation4], 16
    $region29: #{wl2weight_forward_batched.1} parent=1 // pred_fallthru
      _
    // Predicated region
    $region30: #{wl2weight_forward_batched.1} parent=1 // pred_check
      _
    $region31: #{wl2weight_forward_batched.1} parent=1 // pred_check_branch
      %75 = sbr.rel (0) target = $region33
    $region32: #{wl2weight_forward_batched.1} parent=1 // pred_region
      %77 = dma.done [#allocation6], 16
    $region33: #{wl2weight_forward_batched.1} parent=1 // pred_fallthru
      _
    // Predicated region
    $region34: #{wl2weight_forward_batched.1} parent=1 // pred_check
      _
    $region35: #{wl2weight_forward_batched.1} parent=1 // pred_check_branch
      %79 = sbr.rel (0) target = $region37
    $region36: #{wl2weight_forward_batched.1} parent=1 // pred_region
      %81 = dma.done [#allocation3], 64
    $region37: #{wl2weight_forward_batched.1} parent=1 // pred_fallthru
      _
    // Predicated region
    $region38: #{wl2weight_forward_batched.1} parent=1 // pred_check
      _
    $region39: #{wl2weight_forward_batched.1} parent=1 // pred_check_branch
      %83 = sbr.rel (0) target = $region41
    $region40: #{wl2weight_forward_batched.1} parent=1 // pred_region
      %85 = dma.done [#allocation9], 32
    $region41: #{wl2weight_forward_batched.1} parent=1 // pred_fallthru
      _
    // Predicated region
    $region42: #{wl2weight_forward_batched.1} parent=1 // pred_check
      _
    $region43: #{wl2weight_forward_batched.1} parent=1 // pred_check_branch
      %87 = sbr.rel (0) target = $region45
    $region44: #{wl2weight_forward_batched.1} parent=1 // pred_region
      %89 = dma.done [#allocation9], 4096
    $region45: #{wl2weight_forward_batched.1} parent=1 // pred_fallthru
      _
    %90 = sfence
    %s91 = sld [smem:[#allocation2]]
    %s92 = ssub.f32 %s91, 550.0
    %v93 = vrcp.pop 10.0
    %v94 = vmul.f32 10.0, %v93
    %v95 = vsub.f32 1.0, %v94
    %v96 = vmul.f32 %v93, %v95
    %v97 = vadd.f32 %v93, %v96
    %vm98 = vweird.f32 %v93
    %v99 = vsel %vm98, %v93, %v97
    %s100 = vtos %v99
    %s101 = smul.f32 %s92, %s100
    %s102 = sld [smem:[#allocation5]]
    %s103 = ssub.f32 %s102, 55.0
    %v104 = vld [vmem:[#allocation7] ss:$2 sm:$0x3]
    %v105 = vstv %s101
    %v106 = vmul.f32 %v105, %v104
    %s107 = scalar_lea.vmem [#allocation7], 1
    %v108 = vld [vmem:[%s107] ss:$2 sm:$0x3]
    %v109 = vstv %s103
    %v110 = vmul.f32 %v109, %v108
    %v111 = vadd.f32 %v106, %v110
    %v112 = vld [vmem:[#allocation8] sm:$0x3]
    %v113 = vadd.f32 %v111, %v112
    %s114 = sld [smem:[#allocation2 + $0x1]]
    %s115 = ssub.f32 %s114, 550.0
    %v116 = vrcp.pop 10.0
    %v117 = vmul.f32 10.0, %v116
    %v118 = vsub.f32 1.0, %v117
    %v119 = vmul.f32 %v116, %v118
    %v120 = vadd.f32 %v116, %v119
    %vm121 = vweird.f32 %v116
    %v122 = vsel %vm121, %v116, %v120
    %s123 = vtos %v122
    %s124 = smul.f32 %s115, %s123
    %s125 = sld [smem:[#allocation5 + $0x1]]
    %s126 = ssub.f32 %s125, 55.0
    %v127 = vstv %s124
    %v128 = vmul.f32 %v127, %v104
    %v129 = vstv %s126
    %v130 = vmul.f32 %v129, %v108
    %v131 = vadd.f32 %v128, %v130
    %v132 = vadd.f32 %v131, %v112
    %s133 = sld [smem:[#allocation2 + $0x2]]
    %s134 = ssub.f32 %s133, 550.0
    %v135 = vrcp.pop 10.0
    %v136 = vmul.f32 10.0, %v135
    %v137 = vsub.f32 1.0, %v136
    %v138 = vmul.f32 %v135, %v137
    %v139 = vadd.f32 %v135, %v138
    %vm140 = vweird.f32 %v135
    %v141 = vsel %vm140, %v135, %v139
    %s142 = vtos %v141
    %s143 = smul.f32 %s134, %s142
    %s144 = sld [smem:[#allocation5 + $0x2]]
    %s145 = ssub.f32 %s144, 55.0
    %v146 = vstv %s143
    %v147 = vmul.f32 %v146, %v104
    %v148 = vstv %s145
    %v149 = vmul.f32 %v148, %v108
    %v150 = vadd.f32 %v147, %v149
    %v151 = vadd.f32 %v150, %v112
    %s152 = sld [smem:[#allocation2 + $0x3]]
    %s153 = ssub.f32 %s152, 550.0
    %v154 = vrcp.pop 10.0
    %v155 = vmul.f32 10.0, %v154
    %v156 = vsub.f32 1.0, %v155
    %v157 = vmul.f32 %v154, %v156
    %v158 = vadd.f32 %v154, %v157
    %vm159 = vweird.f32 %v154
    %v160 = vsel %vm159, %v154, %v158
    %s161 = vtos %v160
    %s162 = smul.f32 %s153, %s161
    %s163 = sld [smem:[#allocation5 + $0x3]]
    %s164 = ssub.f32 %s163, 55.0
    %v165 = vstv %s162
    %v166 = vmul.f32 %v165, %v104
    %v167 = vstv %s164
    %v168 = vmul.f32 %v167, %v108
    %v169 = vadd.f32 %v166, %v168
    %v170 = vadd.f32 %v169, %v112
    %s171 = sld [smem:[#allocation2 + $0x4]]
    %s172 = ssub.f32 %s171, 550.0
    %v173 = vrcp.pop 10.0
    %v174 = vmul.f32 10.0, %v173
    %v175 = vsub.f32 1.0, %v174
    %v176 = vmul.f32 %v173, %v175
    %v177 = vadd.f32 %v173, %v176
    %vm178 = vweird.f32 %v173
    %v179 = vsel %vm178, %v173, %v177
    %s180 = vtos %v179
    %s181 = smul.f32 %s172, %s180
    %s182 = sld [smem:[#allocation5 + $0x4]]
    %s183 = ssub.f32 %s182, 55.0
    %v184 = vstv %s181
    %v185 = vmul.f32 %v184, %v104
    %v186 = vstv %s183
    %v187 = vmul.f32 %v186, %v108
    %v188 = vadd.f32 %v185, %v187
    %v189 = vadd.f32 %v188, %v112
    %s190 = sld [smem:[#allocation2 + $0x5]]
    %s191 = ssub.f32 %s190, 550.0
    %v192 = vrcp.pop 10.0
    %v193 = vmul.f32 10.0, %v192
    %v194 = vsub.f32 1.0, %v193
    %v195 = vmul.f32 %v192, %v194
    %v196 = vadd.f32 %v192, %v195
    %vm197 = vweird.f32 %v192
    %v198 = vsel %vm197, %v192, %v196
    %s199 = vtos %v198
    %s200 = smul.f32 %s191, %s199
    %s201 = sld [smem:[#allocation5 + $0x5]]
    %s202 = ssub.f32 %s201, 55.0
    %v203 = vstv %s200
    %v204 = vmul.f32 %v203, %v104
    %v205 = vstv %s202
    %v206 = vmul.f32 %v205, %v108
    %v207 = vadd.f32 %v204, %v206
    %v208 = vadd.f32 %v207, %v112
    %s209 = sld [smem:[#allocation2 + $0x6]]
    %s210 = ssub.f32 %s209, 550.0
    %v211 = vrcp.pop 10.0
    %v212 = vmul.f32 10.0, %v211
    %v213 = vsub.f32 1.0, %v212
    %v214 = vmul.f32 %v211, %v213
    %v215 = vadd.f32 %v211, %v214
    %vm216 = vweird.f32 %v211
    %v217 = vsel %vm216, %v211, %v215
    %s218 = vtos %v217
    %s219 = smul.f32 %s210, %s218
    %s220 = sld [smem:[#allocation5 + $0x6]]
    %s221 = ssub.f32 %s220, 55.0
    %v222 = vstv %s219
    %v223 = vmul.f32 %v222, %v104
    %v224 = vstv %s221
    %v225 = vmul.f32 %v224, %v108
    %v226 = vadd.f32 %v223, %v225
    %v227 = vadd.f32 %v226, %v112
    %s228 = sld [smem:[#allocation2 + $0x7]]
    %s229 = ssub.f32 %s228, 550.0
    %v230 = vrcp.pop 10.0
    %v231 = vmul.f32 10.0, %v230
    %v232 = vsub.f32 1.0, %v231
    %v233 = vmul.f32 %v230, %v232
    %v234 = vadd.f32 %v230, %v233
    %vm235 = vweird.f32 %v230
    %v236 = vsel %vm235, %v230, %v234
    %s237 = vtos %v236
    %s238 = smul.f32 %s229, %s237
    %s239 = sld [smem:[#allocation5 + $0x7]]
    %s240 = ssub.f32 %s239, 55.0
    %v241 = vstv %s238
    %v242 = vmul.f32 %v241, %v104
    %v243 = vstv %s240
    %v244 = vmul.f32 %v243, %v108
    %v245 = vadd.f32 %v242, %v244
    %v246 = vadd.f32 %v245, %v112
    %v248 = vperm.slane %v113, 0
    %v249 = vperm.slane %v113, 1
    %v253 = vperm.slane %v132, 0
    %v254 = vperm.slane %v132, 1
    %v258 = vperm.slane %v151, 0
    %v259 = vperm.slane %v151, 1
    %v263 = vperm.slane %v170, 0
    %v264 = vperm.slane %v170, 1
    %v268 = vperm.slane %v189, 0
    %v269 = vperm.slane %v189, 1
    %v273 = vperm.slane %v208, 0
    %v274 = vperm.slane %v208, 1
    %v278 = vperm.slane %v227, 0
    %v279 = vperm.slane %v227, 1
    %v283 = vperm.slane %v246, 0
    %v284 = vperm.slane %v246, 1
    %vm287 = vcmask 1040384
    %v288 = vsel %vm287, %v248, %v253
    %v289 = vsel %vm287, %v249, %v254
    %vm290 = vcmask 1041408
    %v291 = vsel %vm290, %v288, %v258
    %v292 = vsel %vm290, %v289, %v259
    %vm293 = vcmask 1042432
    %v294 = vsel %vm293, %v291, %v263
    %v295 = vsel %vm293, %v292, %v264
    %vm296 = vcmask 1043456
    %v297 = vsel %vm296, %v294, %v268
    %v298 = vsel %vm296, %v295, %v269
    %vm299 = vcmask 1044480
    %v300 = vsel %vm299, %v297, %v273
    %v301 = vsel %vm299, %v298, %v274
    %vm302 = vcmask 1045504
    %v303 = vsel %vm302, %v300, %v278
    %v304 = vsel %vm302, %v301, %v279
    %vm305 = vcmask 1046528
    %v306 = vsel %vm305, %v303, %v283
    %v307 = vsel %vm305, %v304, %v284
    %v308 = vmax.f32 %v306, 0.0
    %v309 = vmax.f32 %v307, 0.0
    %v310 = vld [vmem:[#allocation10] sm:$0xff]
    %v311 = vld [vmem:[#allocation10 + $0x8] sm:$0xff]
    %v312 = vld [vmem:[#allocation10 + $0x10] sm:$0xff]
    %v313 = vld [vmem:[#allocation10 + $0x18] sm:$0xff]
    %v314 = vld [vmem:[#allocation10 + $0x20] sm:$0xff]
    %v315 = vld [vmem:[#allocation10 + $0x28] sm:$0xff]
    %v316 = vld [vmem:[#allocation10 + $0x30] sm:$0xff]
    %v317 = vld [vmem:[#allocation10 + $0x38] sm:$0xff]
    %v318 = vld [vmem:[#allocation10 + $0x40] sm:$0xff]
    %v319 = vld [vmem:[#allocation10 + $0x48] sm:$0xff]
    %v320 = vld [vmem:[#allocation10 + $0x50] sm:$0xff]
    %v321 = vld [vmem:[#allocation10 + $0x58] sm:$0xff]
    %v322 = vld [vmem:[#allocation10 + $0x60] sm:$0xff]
    %v323 = vld [vmem:[#allocation10 + $0x68] sm:$0xff]
    %v324 = vld [vmem:[#allocation10 + $0x70] sm:$0xff]
    %v325 = vld [vmem:[#allocation10 + $0x78] sm:$0xff]
    %v326 = vld [vmem:[#allocation10 + $0x80] sm:$0xff]
    %v327 = vld [vmem:[#allocation10 + $0x88] sm:$0xff]
    %v328 = vld [vmem:[#allocation10 + $0x90] sm:$0xff]
    %v329 = vld [vmem:[#allocation10 + $0x98] sm:$0xff]
    %v330 = vld [vmem:[#allocation10 + $0xa0] sm:$0xff]
    %v331 = vld [vmem:[#allocation10 + $0xa8] sm:$0xff]
    %v332 = vld [vmem:[#allocation10 + $0xb0] sm:$0xff]
    %v333 = vld [vmem:[#allocation10 + $0xb8] sm:$0xff]
    %v334 = vld [vmem:[#allocation10 + $0xc0] sm:$0xff]
    %v335 = vld [vmem:[#allocation10 + $0xc8] sm:$0xff]
    %v336 = vld [vmem:[#allocation10 + $0xd0] sm:$0xff]
    %v337 = vld [vmem:[#allocation10 + $0xd8] sm:$0xff]
    %v338 = vld [vmem:[#allocation10 + $0xe0] sm:$0xff]
    %v339 = vld [vmem:[#allocation10 + $0xe8] sm:$0xff]
    %v340 = vld [vmem:[#allocation10 + $0xf0] sm:$0xff]
    %v341 = vld [vmem:[#allocation10 + $0xf8] sm:$0xff]
    %v342 = vld [vmem:[%s5] sm:$0x1]
    %v344 = vperm.slane %v342, 0
    %346 = vmatpush.msra.mxu0 %v325
    %347 = vmatpush.msra.mxu0 %v324
    %348 = vmatpush.msra.mxu0 %v323
    %349 = vmatpush.msra.mxu0 %v322
    %350 = vmatpush.msra.mxu0 %v321
    %351 = vmatpush.msra.mxu0 %v320
    %352 = vmatpush.msra.mxu0 %v319
    %353 = vmatpush.msra.mxu0 %v318
    %354 = vmatpush.msra.mxu0 %v317
    %355 = vmatpush.msra.mxu0 %v316
    %356 = vmatpush.msra.mxu0 %v315
    %357 = vmatpush.msra.mxu0 %v314
    %358 = vmatpush.msra.mxu0 %v313
    %359 = vmatpush.msra.mxu0 %v312
    %360 = vmatpush.msra.mxu0 %v311
    %361 = vmatpush.msra.mxu0 %v310
    %362 = vmatmul.f32.gmra.mxu0 %v308
    %v363 = vpop.f32.mrf.mxu0
    %v364 = vadd.f32 %v344, %v363
    %365 = vdwg.mxu0
    %366 = vmatpush.msra.mxu0 %v341
    %367 = vmatpush.msra.mxu0 %v340
    %368 = vmatpush.msra.mxu0 %v339
    %369 = vmatpush.msra.mxu0 %v338
    %370 = vmatpush.msra.mxu0 %v337
    %371 = vmatpush.msra.mxu0 %v336
    %372 = vmatpush.msra.mxu0 %v335
    %373 = vmatpush.msra.mxu0 %v334
    %374 = vmatpush.msra.mxu0 %v333
    %375 = vmatpush.msra.mxu0 %v332
    %376 = vmatpush.msra.mxu0 %v331
    %377 = vmatpush.msra.mxu0 %v330
    %378 = vmatpush.msra.mxu0 %v329
    %379 = vmatpush.msra.mxu0 %v328
    %380 = vmatpush.msra.mxu0 %v327
    %381 = vmatpush.msra.mxu0 %v326
    %382 = vmatmul.f32.gmra.mxu0 %v309
    %v383 = vpop.f32.mrf.mxu0
    %v384 = vadd.f32 %v364, %v383
    %385 = vdwg.mxu0
    %v386 = vxor.u32 %v384, 2147483648
    %v387 = vmul.f32 %v386, 1.442695
    %v388 = vpow.pop %v387
    %v389 = vadd.f32 %v388, 1.0
    %v390 = vrcp.pop %v389
    %v391 = vmul.f32 %v389, %v390
    %v392 = vsub.f32 1.0, %v391
    %v393 = vmul.f32 %v390, %v392
    %v394 = vadd.f32 %v390, %v393
    %vm395 = vweird.f32 %v389
    %vm396 = vweird.f32 %v390
    %vm397 = vmor %vm395, %vm396
    %v398 = vsel %vm397, %v390, %v394
    %v399 = vand.u32 2147483647, %v389
    %vm400 = vcmp.eq.f32.partialorder %v399, 8.507059e+37
    %v401 = vand.u32 %v389, 2147483648
    %v402 = vor.u32 1.1754944e-38, %v401
    %v403 = vsel %vm400, %v402, %v398
    %v404 = vmul.f32 1.0, %v403
    %405 = vst [vmem:[%s6] sm:$0xff] %v404
    // Predicated region
    $region46: #{wl2weight_forward_batched.1} parent=1 // pred_check
      _
    $region47: #{wl2weight_forward_batched.1} parent=1 // pred_check_branch
      %407 = sbr.rel (0) target = $region49
    $region48: #{wl2weight_forward_batched.1} parent=1 // pred_region
      _
    $region49: #{wl2weight_forward_batched.1} parent=1 // pred_fallthru
      _
    // Predicated region
    $region50: #{wl2weight_forward_batched.1} parent=1 // pred_check
      _
    $region51: #{wl2weight_forward_batched.1} parent=1 // pred_check_branch
      %409 = sbr.rel (0) target = $region53
    $region52: #{wl2weight_forward_batched.1} parent=1 // pred_region
      _
    $region53: #{wl2weight_forward_batched.1} parent=1 // pred_fallthru
      _
    %410 = vsyncpa [#allocation3], 1
    %411 = vsyncpa [#allocation9], 1
    %412 = vsyncpa [#allocation4], 1
    %413 = vsyncpa [#allocation6], 1

</llo_original>
